<compile_context>
chip_gen: v6e
topology: v6e:2x2x1
jax: 0.10.0
libtpu: 0.0.40
codegen_flags: <defaults>
</compile_context>

<pallas_src>
import functools

import numpy as np
import jax
import jax.numpy as jnp
from jax.experimental import pallas as pl
from jax.experimental.pallas import tpu as pltpu


# ----------------------------------------------------------------------------
# Deterministic operator construction (plain numpy "parameter" setup)
# ----------------------------------------------------------------------------
def _cubic(x, a=-0.5):
    x = abs(float(x))
    if x < 1.0:
        return (a + 2.0) * x ** 3 - (a + 3.0) * x ** 2 + 1.0
    elif x < 2.0:
        return a * x ** 3 - 5.0 * a * x ** 2 + 8.0 * a * x - 4.0 * a
    return 0.0


def bicubic_antialias_matrix(in_size: int, out_size: int) -> np.ndarray:
    """Row-resampling matrix matching torch/PIL antialiased bicubic downscale."""
    scale = in_size / out_size
    filterscale = max(scale, 1.0)
    support = 2.0 * filterscale
    M = np.zeros((out_size, in_size), dtype=np.float64)
    for i in range(out_size):
        center = (i + 0.5) * scale
        xmin = max(int(center - support + 0.5), 0)
        xmax = min(int(center + support + 0.5), in_size)
        w = np.array([_cubic((j - center + 0.5) / filterscale)
                      for j in range(xmin, xmax)], dtype=np.float64)
        w /= w.sum()
        M[i, xmin:xmax] = w
    return M


def gaussian_blur_matrix(n: int, kernel_size: int = 5, sigma: float = 0.5) -> np.ndarray:
    """1D Gaussian blur (torchvision kernel) with PyTorch 'reflect' padding as a matrix."""
    half = (kernel_size - 1) * 0.5
    x = np.linspace(-half, half, kernel_size)
    pdf = np.exp(-0.5 * (x / sigma) ** 2)
    k1d = pdf / pdf.sum()
    r = kernel_size // 2
    M = np.zeros((n, n), dtype=np.float64)
    for i in range(n):
        for t in range(kernel_size):
            j = i + t - r
            if j < 0:
                j = -j                      # reflect (excludes edge)
            elif j >= n:
                j = 2 * n - 2 - j
            M[i, j] += k1d[t]
    return M


# ----------------------------------------------------------------------------
# Pallas kernel
#   per grid step: d = x - y over TB planes, one batched (TB*H,W)@(W,Ws) matmul,
#   TB small (Hs,H)@(H,Ws) matmuls, |.| accumulated elementwise into the resident
#   (1,Hs,Ws) output block.
# ----------------------------------------------------------------------------
def _bicubic_loss_kernel(x_ref, y_ref, mh_ref, mwt_ref, out_ref, *, tb, h, w, hs, ws):
    i = pl.program_id(1)

    @pl.when(i == 0)
    def _():
        out_ref[...] = jnp.zeros_like(out_ref)

    # Diff-first (ds is linear): ds(x) - ds(y) == ds(x - y)  -> half the MXU work.
    d = x_ref[...].astype(jnp.float32) - y_ref[...].astype(jnp.float32)   # (TB, H, W)

    mh = mh_ref[...]                                                      # (Hs, H)
    mwt = mwt_ref[...]                                                    # (W, Ws)

    batched_w_side = (h % 8 == 0)
    if batched_w_side:
        # One large MXU matmul over all TB planes (merge leading dims; lane dim unchanged).
        t1 = jnp.dot(d.reshape(tb * h, w), mwt,
                     preferred_element_type=jnp.float32)                  # (TB*H, Ws)

    acc = jnp.zeros((hs, ws), jnp.float32)
    for b in range(tb):                                                   # unrolled, tb <= 8
        if batched_w_side:
            plane = t1[b * h:(b + 1) * h, :]                              # (H, Ws)
        else:
            plane = jnp.dot(d[b], mwt, preferred_element_type=jnp.float32)
        ds_b = jnp.dot(mh, plane, preferred_element_type=jnp.float32)     # (Hs, Ws)
        acc = acc + jnp.abs(ds_b)

    out_ref[...] += acc                                                   # broadcast to (1,Hs,Ws)


def bicubic_loss(x: jax.Array, y: jax.Array, scale: int = 4) -> jax.Array:
    """x, y: NCHW arrays. Returns scalar L1 loss of downscaled+blurred images."""
    B, C, H, W = x.shape
    Hs, Ws = H // scale, W // scale
    assert Hs > 0 and Ws > 0, "image smaller than the downscale factor"

    # Fold (blur o resize) into single per-axis matrices.
    mh = (gaussian_blur_matrix(Hs) @ bicubic_antialias_matrix(H, Hs)).astype(np.float32)  # (Hs, H)
    mw = (gaussian_blur_matrix(Ws) @ bicubic_antialias_matrix(W, Ws)).astype(np.float32)  # (Ws, W)
    mwt = np.ascontiguousarray(mw.T)                                                       # (W, Ws)

    N = B * C
    # Keep bf16 inputs in bf16 in HBM (halves read traffic); upcast in-register in the kernel.
    if x.dtype in (jnp.float32, jnp.bfloat16):
        dtype = x.dtype
    else:
        dtype = jnp.float32
    itemsize = np.dtype(dtype).itemsize

    xf = x.reshape(N, H, W).astype(dtype)
    yf = y.reshape(N, H, W).astype(dtype)

    # Two output partials -> both TensorCores usable on v7x; harmless on v5e/v6e.
    NSPLIT = 2 if N >= 2 else 1

    # TB planes per grid step: big enough to fill the MXU / amortize per-step overhead,
    # capped by a VMEM budget for the double-buffered x & y input blocks.
    vmem_budget = 24 * 1024 * 1024
    tb_vmem = max(1, vmem_budget // (4 * H * W * itemsize))   # 2 arrays x 2 buffers
    tb_mxu = max(1, -(-256 // H))                             # TB*H >= 256 fills v6e/v7x MXU
    per_split = -(-N // NSPLIT)
    TB = int(max(1, min(8, tb_vmem, per_split, tb_mxu)))

    # Pad plane count so it divides NSPLIT*TB; zero planes contribute 0 to the L1 sum.
    blocks = -(-N // (NSPLIT * TB)) * NSPLIT
    Npad = blocks * TB
    if Npad > N:
        pad = jnp.zeros((Npad - N, H, W), dtype)
        xf = jnp.concatenate([xf, pad], axis=0)
        yf = jnp.concatenate([yf, pad], axis=0)
    steps = blocks // NSPLIT

    kernel = functools.partial(_bicubic_loss_kernel, tb=TB, h=H, w=W, hs=Hs, ws=Ws)

    # Explicit VMEM limit (matters mostly on v7x's smaller VMEM).
    # TODO(synk): mh/mwt are grid-invariant; single-buffering them (pl.Buffered(1)) would save
    #             a little more VMEM at very large H/W — accounted for in the budget instead.
    vmem_need = (4 * TB * H * W * itemsize            # x,y double-buffered
                 + 16 * (Hs * H + W * Ws)             # mh,mwt double-buffered (overestimate)
                 + 8 * Hs * Ws                        # output block double-buffered
                 + (2 << 20))
    vmem_limit = int(min(max(32 << 20, vmem_need), 56 << 20))

    out = pl.pallas_call(
        kernel,
        out_shape=jax.ShapeDtypeStruct((NSPLIT, Hs, Ws), jnp.float32),
        grid_spec=pltpu.PrefetchScalarGridSpec(
            num_scalar_prefetch=0,
            grid=(NSPLIT, steps),
            in_specs=[
                pl.BlockSpec((TB, H, W), lambda c, i: (c * steps + i, 0, 0)),
                pl.BlockSpec((TB, H, W), lambda c, i: (c * steps + i, 0, 0)),
                pl.BlockSpec((Hs, H), lambda c, i: (0, 0)),
                pl.BlockSpec((W, Ws), lambda c, i: (0, 0)),
            ],
            out_specs=pl.BlockSpec((1, Hs, Ws), lambda c, i: (c, 0, 0)),
        ),
        compiler_params=pltpu.CompilerParams(
            dimension_semantics=("parallel", "arbitrary"),
            vmem_limit_bytes=vmem_limit,
        ),
    )(xf, yf, jnp.asarray(mh), jnp.asarray(mwt))

    inv_total = 1.0 / float(N * Hs * Ws)
    return jnp.sum(out) * inv_total


# Pure-JAX reference (same folded-matrix math) for a quick sanity check.
def _bicubic_loss_ref(x, y, scale=4):
    B, C, H, W = x.shape
    Hs, Ws = H // scale, W // scale
    mh = jnp.asarray((gaussian_blur_matrix(Hs) @ bicubic_antialias_matrix(H, Hs)).astype(np.float32))
    mw = jnp.asarray((gaussian_blur_matrix(Ws) @ bicubic_antialias_matrix(W, Ws)).astype(np.float32))
    ds = lambda t: jnp.einsum('hH,bcHW,wW->bchw', mh, t.astype(jnp.float32), mw)
    return jnp.mean(jnp.abs(ds(x) - ds(y)))


if __name__ == "__main__":
    key = jax.random.PRNGKey(0)
    kx, ky = jax.random.split(key)
    B, C, H, W = 2, 3, 32, 32
    x = jax.random.uniform(kx, (B, C, H, W), dtype=jnp.float32)
    y = jax.random.uniform(ky, (B, C, H, W), dtype=jnp.float32)

    loss = bicubic_loss(x, y, scale=4)
    jax.block_until_ready(loss)

    ref = _bicubic_loss_ref(x, y, scale=4)
    assert np.allclose(np.asarray(loss), np.asarray(ref), rtol=1e-4, atol=1e-5), (loss, ref)

    print("KERNEL_OK")
</pallas_src>

<mosaic_0001>
module attributes {stable_mosaic.version = 11 : i64} {
  func.func @_bicubic_loss_kernel(%arg0: i32, %arg1: i32, %arg2: memref<3x32x32xf32, #tpu.memory_space<vmem>>, %arg3: memref<3x32x32xf32, #tpu.memory_space<vmem>>, %arg4: memref<8x32xf32, #tpu.memory_space<vmem>>, %arg5: memref<32x8xf32, #tpu.memory_space<vmem>>, %arg6: memref<1x8x8xf32, #tpu.memory_space<vmem>>) attributes {dimension_semantics = [#tpu.dimension_semantics<parallel>, #tpu.dimension_semantics<arbitrary>], iteration_bounds = array<i64: 2, 1>, scalar_prefetch = 0 : i64, scratch_operands = 0 : i64, tpu.core_type = #tpu.core_type<tc>, window_params = [{transform_indices = @transform_0, window_bounds = array<i64: 3, 32, 32>}, {transform_indices = @transform_1, window_bounds = array<i64: 3, 32, 32>}, {pipeline_mode = #tpu.pipeline_mode<synchronous>, transform_indices = @transform_2, window_bounds = array<i64: 8, 32>}, {pipeline_mode = #tpu.pipeline_mode<synchronous>, transform_indices = @transform_3, window_bounds = array<i64: 32, 8>}, {transform_indices = @transform_4, window_bounds = array<i64: 1, 8, 8>}]} {
    %c0_i32 = arith.constant 0 : i32
    %0 = arith.cmpi eq, %arg1, %c0_i32 : i32
    %1 = arith.extui %0 : i1 to i32
    %c0_i32_0 = arith.constant 0 : i32
    %2 = arith.cmpi ne, %1, %c0_i32_0 : i32
    scf.if %2 {
      %cst_20 = arith.constant 0.000000e+00 : f32
      %27 = vector.broadcast %cst_20 : f32 to vector<1x8x8xf32>
      %c0_21 = arith.constant 0 : index
      %c0_22 = arith.constant 0 : index
      %c0_23 = arith.constant 0 : index
      %28 = vector.load %arg6[%c0_21, %c0_22, %c0_23] : memref<1x8x8xf32, #tpu.memory_space<vmem>>, vector<1x8x8xf32>
      tpu.vector_store %arg6[%c0_21, %c0_22, %c0_23], %27 {strides = array<i32>} : memref<1x8x8xf32, #tpu.memory_space<vmem>>, vector<1x8x8xf32>,
    } else {
    }
    %c0 = arith.constant 0 : index
    %c0_1 = arith.constant 0 : index
    %c0_2 = arith.constant 0 : index
    %3 = vector.load %arg2[%c0, %c0_1, %c0_2] : memref<3x32x32xf32, #tpu.memory_space<vmem>>, vector<3x32x32xf32>
    %c0_3 = arith.constant 0 : index
    %c0_4 = arith.constant 0 : index
    %c0_5 = arith.constant 0 : index
    %4 = vector.load %arg3[%c0_3, %c0_4, %c0_5] : memref<3x32x32xf32, #tpu.memory_space<vmem>>, vector<3x32x32xf32>
    %5 = arith.subf %3, %4 : vector<3x32x32xf32>
    %c0_6 = arith.constant 0 : index
    %c0_7 = arith.constant 0 : index
    %6 = vector.load %arg4[%c0_6, %c0_7] : memref<8x32xf32, #tpu.memory_space<vmem>>, vector<8x32xf32>
    %c0_8 = arith.constant 0 : index
    %c0_9 = arith.constant 0 : index
    %7 = vector.load %arg5[%c0_8, %c0_9] : memref<32x8xf32, #tpu.memory_space<vmem>>, vector<32x8xf32>
    %8 = vector.shape_cast %5 : vector<3x32x32xf32> to vector<96x32xf32>
    %cst = arith.constant dense<0.000000e+00> : vector<96x8xf32>
    %9 = tpu.matmul %8, %7, %cst {dimension_numbers = #tpu.dot_dimension_numbers<[1], [0], [0], [1], [0, 0, 1, 1], [], []>} : vector<96x32xf32>, vector<32x8xf32>, vector<96x8xf32> -> vector<96x8xf32>
    %cst_10 = arith.constant 0.000000e+00 : f32
    %10 = vector.broadcast %cst_10 : f32 to vector<8x8xf32>
    %11 = vector.extract_strided_slice %9 {offsets = [0, 0], sizes = [32, 8], strides = [1, 1]} : vector<96x8xf32> to vector<32x8xf32>
    %cst_11 = arith.constant dense<0.000000e+00> : vector<8x8xf32>
    %12 = tpu.matmul %6, %11, %cst_11 {dimension_numbers = #tpu.dot_dimension_numbers<[1], [0], [0], [1], [0, 0, 1, 1], [], []>} : vector<8x32xf32>, vector<32x8xf32>, vector<8x8xf32> -> vector<8x8xf32>
    %13 = math.absf %12 : vector<8x8xf32>
    %14 = arith.addf %10, %13 : vector<8x8xf32>
    %15 = vector.extract_strided_slice %9 {offsets = [32, 0], sizes = [32, 8], strides = [1, 1]} : vector<96x8xf32> to vector<32x8xf32>
    %cst_12 = arith.constant dense<0.000000e+00> : vector<8x8xf32>
    %16 = tpu.matmul %6, %15, %cst_12 {dimension_numbers = #tpu.dot_dimension_numbers<[1], [0], [0], [1], [0, 0, 1, 1], [], []>} : vector<8x32xf32>, vector<32x8xf32>, vector<8x8xf32> -> vector<8x8xf32>
    %17 = math.absf %16 : vector<8x8xf32>
    %18 = arith.addf %14, %17 : vector<8x8xf32>
    %19 = vector.extract_strided_slice %9 {offsets = [64, 0], sizes = [32, 8], strides = [1, 1]} : vector<96x8xf32> to vector<32x8xf32>
    %cst_13 = arith.constant dense<0.000000e+00> : vector<8x8xf32>
    %20 = tpu.matmul %6, %19, %cst_13 {dimension_numbers = #tpu.dot_dimension_numbers<[1], [0], [0], [1], [0, 0, 1, 1], [], []>} : vector<8x32xf32>, vector<32x8xf32>, vector<8x8xf32> -> vector<8x8xf32>
    %21 = math.absf %20 : vector<8x8xf32>
    %22 = arith.addf %18, %21 : vector<8x8xf32>
    %c0_14 = arith.constant 0 : index
    %c0_15 = arith.constant 0 : index
    %c0_16 = arith.constant 0 : index
    %23 = vector.load %arg6[%c0_14, %c0_15, %c0_16] : memref<1x8x8xf32, #tpu.memory_space<vmem>>, vector<1x8x8xf32>
    %24 = vector.shape_cast %22 : vector<8x8xf32> to vector<1x8x8xf32>
    %25 = arith.addf %23, %24 : vector<1x8x8xf32>
    %c0_17 = arith.constant 0 : index
    %c0_18 = arith.constant 0 : index
    %c0_19 = arith.constant 0 : index
    %26 = vector.load %arg6[%c0_17, %c0_18, %c0_19] : memref<1x8x8xf32, #tpu.memory_space<vmem>>, vector<1x8x8xf32>
    tpu.vector_store %arg6[%c0_17, %c0_18, %c0_19], %25 {strides = array<i32>} : memref<1x8x8xf32, #tpu.memory_space<vmem>>, vector<1x8x8xf32>,
    return
  }
  func.func @transform_0(%arg0: i32, %arg1: i32) -> (i32, i32, i32) {
    %c1_i32 = arith.constant 1 : i32
    %0 = arith.muli %arg0, %c1_i32 : i32
    %1 = arith.addi %0, %arg1 : i32
    %c0_i32 = arith.constant 0 : i32
    %c0_i32_0 = arith.constant 0 : i32
    %c0_i32_1 = arith.constant 0 : i32
    return %1, %c0_i32, %c0_i32_0 : i32, i32, i32
  }
  func.func @transform_1(%arg0: i32, %arg1: i32) -> (i32, i32, i32) {
    %c1_i32 = arith.constant 1 : i32
    %0 = arith.muli %arg0, %c1_i32 : i32
    %1 = arith.addi %0, %arg1 : i32
    %c0_i32 = arith.constant 0 : i32
    %c0_i32_0 = arith.constant 0 : i32
    %c0_i32_1 = arith.constant 0 : i32
    return %1, %c0_i32, %c0_i32_0 : i32, i32, i32
  }
  func.func @transform_2(%arg0: i32, %arg1: i32) -> (i32, i32) {
    %c0_i32 = arith.constant 0 : i32
    %c0_i32_0 = arith.constant 0 : i32
    %c0_i32_1 = arith.constant 0 : i32
    return %c0_i32, %c0_i32_0 : i32, i32
  }
  func.func @transform_3(%arg0: i32, %arg1: i32) -> (i32, i32) {
    %c0_i32 = arith.constant 0 : i32
    %c0_i32_0 = arith.constant 0 : i32
    %c0_i32_1 = arith.constant 0 : i32
    return %c0_i32, %c0_i32_0 : i32, i32
  }
  func.func @transform_4(%arg0: i32, %arg1: i32) -> (i32, i32, i32) {
    %c0_i32 = arith.constant 0 : i32
    %c0_i32_0 = arith.constant 0 : i32
    %c0_i32_1 = arith.constant 0 : i32
    return %arg0, %c0_i32, %c0_i32_0 : i32, i32, i32
  }
}

</mosaic_0001>

<llo_original>
// kernel: tpu_custom_call.1
$region0: #{tpu_custom_call.1}
  #allocation0 [shape = 'u32[]', space=smem, size = 0x4, offset = 0x4, fixed_abs, tag = 'smem constant byte address 0x4 - core index']
  #allocation1 [shape = 'u32[144,128]{1,0:T(1,128)}', space=vmem, size = 0x12000, scoped, tag = 'internal scratch']
  %s0 = inlined_call_operand.hbm [shape: f32[6,32,32], index: 0, kind: input, shape index: {}]
  %s1 = inlined_call_operand.hbm [shape: f32[6,32,32], index: 1, kind: input, shape index: {}]
  %s2 = inlined_call_operand.vmem [shape: f32[8,32], index: 2, kind: input, shape index: {}]
  %s3 = inlined_call_operand.vmem [shape: f32[32,8], index: 3, kind: input, shape index: {}]
  %s4 = inlined_call_operand.hbm [shape: f32[2,8,8], index: 4, kind: output, shape index: {}]
  %s5 = sld [smem:[#allocation0]]
  $region61: #{tpu_custom_call.1} parent=0
    _
  %s7 = ssub.s32 1, %s5
  %s8 = scalar_select 0, %s7, %s5
  $region1: #{tpu_custom_call.1} parent=0
    #allocation2 [shape = 'u8[98304]{0}', space=vmem, size = 0x18000, scoped, tag = 'input window, operand 0']
    #allocation3 [shape = 's32[2]{0}', space=sflag, size = 0x8, scoped, tag = 'scoped memory for tpu_custom_call.1']
    #allocation4 [shape = 's32[2]{0}', space=sflag, size = 0x8, scoped, tag = 'scoped memory for tpu_custom_call.1']
    #allocation5 [shape = 'u8[98304]{0}', space=vmem, size = 0x18000, scoped, tag = 'input window, operand 1']
    #allocation6 [shape = 's32[2]{0}', space=sflag, size = 0x8, scoped, tag = 'scoped memory for tpu_custom_call.1']
    #allocation7 [shape = 'u8[8192]{0}', space=vmem, size = 0x2000, scoped, tag = 'output window, operand 0']
    %9 = vsyncpa [#allocation3], 0
    %s10 = scalar_lea.sflag [#allocation3], 1
    %11 = vsyncpa %s10, 0
    %12 = vsyncpa [#allocation6], 0
    %s13 = scalar_lea.sflag [#allocation6], 1
    %14 = vsyncpa %s13, 0
    %15 = vsyncpa [#allocation4], 0
    %s16 = scalar_lea.sflag [#allocation4], 1
    %17 = vsyncpa %s16, 0
    loop: start=0, step=1, limit=4
    $region2: #{tpu_custom_call.1} parent=1 // loop_pre_header
      _
    $region3: #{tpu_custom_call.1} parent=1 // loop_header
      %s19 = sphi 0, %s23
      %p20 = scmp.ge.s32.totalorder %s19, 4
      %s26 = sphi 0, %s38
      %s27 = sphi 0, %s34
      %s28 = sphi 0, %s26
      %s29 = sphi 0, %s27
      %s30 = sphi 0, %s28
      %s31 = sphi 0, %s29
      %s43 = sphi 0, %s45
      %s46 = sphi 0, %s43
      %s47 = sphi 0, %s46
      %s63 = sphi 0, %s47
      %s71 = sphi 0, %s73
      %s74 = sphi 0, %s71
      %s75 = sphi 0, %s74
      %s91 = sphi 0, %s75
      %s95 = sphi 0, %s95
      %s97 = sphi 0, %s95
      %s98 = sphi 0, %s97
      %s112 = sphi 0, %s98
      %s116 = sphi 0, %s116
      %s118 = sphi 0, %s116
      %s119 = sphi 0, %s118
      %s133 = sphi 0, %s119
      %s139 = sphi 0, %s141
      %s142 = sphi 0, %s139
      %s143 = sphi 0, %s142
      %s159 = sphi 0, %s143
    $region4: #{tpu_custom_call.1} parent=1 // loop_header_branch
      %22 = sbr.rel (%p20) target = $region8
    $region5: #{tpu_custom_call.1} parent=1 // loop_body
      %s24 = ssub.s32 %s19, 1
      %s25 = ssub.s32 %s19, 2
      %s32 = sadd.s32 1, %s27
      %p33 = scmp.ge.s32.totalorder %s32, 1
      %s34 = scalar_select %p33, 0, %s32
      %s35 = sadd.s32 1, %s26
      %s36 = scalar_select %p33, %s35, %s26
      %p37 = scmp.ge.s32.totalorder %s36, 2
      %s38 = scalar_select %p37, 0, %s36
      %s39 = sadd.s32 %s26, %s27
      %s40 = sadd.s32 %s38, %s34
      %s41 = ssub.s32 %s39, %s40
      %p42 = scmp.eq.s32.totalorder %s41, 0
      %s44 = sadd.s32 %s43, 1
      %s45 = scalar_select %p42, %s43, %s44
      %p48 = pneg %p42
      %p49 = scmp.eq.s32.totalorder %s19, 1
      %p50 = por %p48, %p49
      %p51 = scmp.ne.s32.totalorder %s43, %s46
      %p52 = scmp.eq.s32.totalorder %s19, 0
      %p53 = por %p51, %p52
      %p54 = scmp.ne.s32.totalorder %s43, %s46
      %p55 = scmp.eq.s32.totalorder %s24, 1
      %p56 = por %p54, %p55
      %p57 = scmp.ne.s32.totalorder %s46, %s47
      %p58 = scmp.eq.s32.totalorder %s24, 0
      %p59 = por %p57, %p58
      %p60 = scmp.ne.s32.totalorder %s46, %s47
      %p61 = scmp.eq.s32.totalorder %s25, 1
      %p62 = por %p60, %p61
      %p64 = scmp.ne.s32.totalorder %s47, %s63
      %p65 = scmp.eq.s32.totalorder %s25, 0
      %p66 = por %p64, %p65
      %s67 = sadd.s32 %s26, %s27
      %s68 = sadd.s32 %s38, %s34
      %s69 = ssub.s32 %s67, %s68
      %p70 = scmp.eq.s32.totalorder %s69, 0
      %s72 = sadd.s32 %s71, 1
      %s73 = scalar_select %p70, %s71, %s72
      %p76 = pneg %p70
      %p77 = scmp.eq.s32.totalorder %s19, 1
      %p78 = por %p76, %p77
      %p79 = scmp.ne.s32.totalorder %s71, %s74
      %p80 = scmp.eq.s32.totalorder %s19, 0
      %p81 = por %p79, %p80
      %p82 = scmp.ne.s32.totalorder %s71, %s74
      %p83 = scmp.eq.s32.totalorder %s24, 1
      %p84 = por %p82, %p83
      %p85 = scmp.ne.s32.totalorder %s74, %s75
      %p86 = scmp.eq.s32.totalorder %s24, 0
      %p87 = por %p85, %p86
      %p88 = scmp.ne.s32.totalorder %s74, %s75
      %p89 = scmp.eq.s32.totalorder %s25, 1
      %p90 = por %p88, %p89
      %p92 = scmp.ne.s32.totalorder %s75, %s91
      %p93 = scmp.eq.s32.totalorder %s25, 0
      %p94 = por %p92, %p93
      %s96 = sadd.s32 %s95, 1
      %p99 = scmp.eq.s32.totalorder %s19, 1
      %p100 = scmp.ne.s32.totalorder %s95, %s97
      %p101 = scmp.eq.s32.totalorder %s19, 0
      %p102 = por %p100, %p101
      %p103 = scmp.ne.s32.totalorder %s95, %s97
      %p104 = scmp.eq.s32.totalorder %s24, 1
      %p105 = por %p103, %p104
      %p106 = scmp.ne.s32.totalorder %s97, %s98
      %p107 = scmp.eq.s32.totalorder %s24, 0
      %p108 = por %p106, %p107
      %p109 = scmp.ne.s32.totalorder %s97, %s98
      %p110 = scmp.eq.s32.totalorder %s25, 1
      %p111 = por %p109, %p110
      %p113 = scmp.ne.s32.totalorder %s98, %s112
      %p114 = scmp.eq.s32.totalorder %s25, 0
      %p115 = por %p113, %p114
      %s117 = sadd.s32 %s116, 1
      %p120 = scmp.eq.s32.totalorder %s19, 1
      %p121 = scmp.ne.s32.totalorder %s116, %s118
      %p122 = scmp.eq.s32.totalorder %s19, 0
      %p123 = por %p121, %p122
      %p124 = scmp.ne.s32.totalorder %s116, %s118
      %p125 = scmp.eq.s32.totalorder %s24, 1
      %p126 = por %p124, %p125
      %p127 = scmp.ne.s32.totalorder %s118, %s119
      %p128 = scmp.eq.s32.totalorder %s24, 0
      %p129 = por %p127, %p128
      %p130 = scmp.ne.s32.totalorder %s118, %s119
      %p131 = scmp.eq.s32.totalorder %s25, 1
      %p132 = por %p130, %p131
      %p134 = scmp.ne.s32.totalorder %s119, %s133
      %p135 = scmp.eq.s32.totalorder %s25, 0
      %p136 = por %p134, %p135
      %s137 = ssub.s32 %s26, %s38
      %p138 = scmp.eq.s32.totalorder %s137, 0
      %s140 = sadd.s32 %s139, 1
      %s141 = scalar_select %p138, %s139, %s140
      %p144 = pneg %p138
      %p145 = scmp.eq.s32.totalorder %s19, 1
      %p146 = por %p144, %p145
      %p147 = scmp.ne.s32.totalorder %s139, %s142
      %p148 = scmp.eq.s32.totalorder %s19, 0
      %p149 = por %p147, %p148
      %p150 = scmp.ne.s32.totalorder %s139, %s142
      %p151 = scmp.eq.s32.totalorder %s24, 1
      %p152 = por %p150, %p151
      %p153 = scmp.ne.s32.totalorder %s142, %s143
      %p154 = scmp.eq.s32.totalorder %s24, 0
      %p155 = por %p153, %p154
      %p156 = scmp.ne.s32.totalorder %s142, %s143
      %p157 = scmp.eq.s32.totalorder %s25, 1
      %p158 = por %p156, %p157
      %p160 = scmp.ne.s32.totalorder %s143, %s159
      %p161 = scmp.eq.s32.totalorder %s25, 0
      %p162 = por %p160, %p161
      %p163 = scmp.le.s32.totalorder 1, %s19
      %p164 = scmp.lt.s32.totalorder %s19, 3
      %p165 = pnand %p163, %p164
      %p166 = pneg %p165
      // Predicated region
      $region9: #{tpu_custom_call.1} parent=5 // pred_check
        _
      $region10: #{tpu_custom_call.1} parent=5 // pred_check_branch
        %168 = sbr.rel (%p165) target = $region12
      $region11: #{tpu_custom_call.1} parent=5 // pred_region
        %s169 = ssub.s32 %s19, 1
        // Predicated region
        $region13: #{tpu_custom_call.1} parent=11 // pred_check
          %p170 = pneg %p108
        $region14: #{tpu_custom_call.1} parent=11 // pred_check_branch
          %172 = sbr.rel (%p170) target = $region16
        $region15: #{tpu_custom_call.1} parent=11 // pred_region
          _
        $region16: #{tpu_custom_call.1} parent=11 // pred_fallthru
          _
        // Predicated region
        $region17: #{tpu_custom_call.1} parent=11 // pred_check
          %p173 = pneg %p129
        $region18: #{tpu_custom_call.1} parent=11 // pred_check_branch
          %175 = sbr.rel (%p173) target = $region20
        $region19: #{tpu_custom_call.1} parent=11 // pred_region
          _
        $region20: #{tpu_custom_call.1} parent=11 // pred_fallthru
          _
      $region12: #{tpu_custom_call.1} parent=5 // pred_fallthru
        _
      %p176 = scmp.lt.s32.totalorder %s19, 2
      // Predicated region
      $region21: #{tpu_custom_call.1} parent=5 // pred_check
        %p177 = pneg %p176
      $region22: #{tpu_custom_call.1} parent=5 // pred_check_branch
        %179 = sbr.rel (%p177) target = $region24
      $region23: #{tpu_custom_call.1} parent=5 // pred_region
        // Predicated region
        $region25: #{tpu_custom_call.1} parent=23 // pred_check
          %p180 = pneg %p53
        $region26: #{tpu_custom_call.1} parent=23 // pred_check_branch
          %182 = sbr.rel (%p180) target = $region28
        $region27: #{tpu_custom_call.1} parent=23 // pred_region
          %s183 = sand.u32 %s43, 1
          %s184 = scalar_lea.sflag [#allocation3], %s183
          %s185 = sand.u32 %s43, 1
          %s186 = smul.addr %s185, 96
          %s187 = scalar_lea.vmem [#allocation2], %s186
          %s188 = sadd.s32 %s26, %s27
          %s189 = smul.u32 3, %s188
          %s191 = ssub.s32 1536, 1536
          %192 = vsyncadd %s184, %s191
          %s193 = smul.addr %s189, 4
          %s194 = smul.addr %s193, 128
          %s195 = scalar_lea.hbm %s0, %s194
          %s196 = sshll.u32 %s187, 4
          %s197 = int_to_ptr.vmem [resolvable:$true] %s196
          %202 = dma.hbm_to_vmem [thread:$0]  %s195, 1536, %s197, %s184, 128, 128, 8
        $region28: #{tpu_custom_call.1} parent=23 // pred_fallthru
          _
        // Predicated region
        $region29: #{tpu_custom_call.1} parent=23 // pred_check
          %p203 = pneg %p81
        $region30: #{tpu_custom_call.1} parent=23 // pred_check_branch
          %205 = sbr.rel (%p203) target = $region32
        $region31: #{tpu_custom_call.1} parent=23 // pred_region
          %s206 = sand.u32 %s71, 1
          %s207 = scalar_lea.sflag [#allocation6], %s206
          %s208 = sand.u32 %s71, 1
          %s209 = smul.addr %s208, 96
          %s210 = scalar_lea.vmem [#allocation5], %s209
          %s211 = sadd.s32 %s26, %s27
          %s212 = smul.u32 3, %s211
          %s214 = ssub.s32 1536, 1536
          %215 = vsyncadd %s207, %s214
          %s216 = smul.addr %s212, 4
          %s217 = smul.addr %s216, 128
          %s218 = scalar_lea.hbm %s1, %s217
          %s219 = sshll.u32 %s210, 4
          %s220 = int_to_ptr.vmem [resolvable:$true] %s219
          %225 = dma.hbm_to_vmem [thread:$0]  %s218, 1536, %s220, %s207, 128, 128, 8
        $region32: #{tpu_custom_call.1} parent=23 // pred_fallthru
          _
      $region24: #{tpu_custom_call.1} parent=5 // pred_fallthru
        _
      %p226 = scmp.le.s32.totalorder 1, %s19
      %p227 = scmp.lt.s32.totalorder %s19, 3
      %p228 = pnand %p226, %p227
      %p229 = pneg %p228
      // Predicated region
      $region33: #{tpu_custom_call.1} parent=5 // pred_check
        _
      $region34: #{tpu_custom_call.1} parent=5 // pred_check_branch
        %231 = sbr.rel (%p228) target = $region36
      $region35: #{tpu_custom_call.1} parent=5 // pred_region
        %s232 = ssub.s32 %s19, 1
        %s233 = sand.u32 %s46, 1
        %s234 = scalar_lea.sflag [#allocation3], %s233
        %s235 = sand.u32 %s46, 1
        %s236 = smul.addr %s235, 96
        %s237 = scalar_lea.vmem [#allocation2], %s236
        // Predicated region
        $region37: #{tpu_custom_call.1} parent=35 // pred_check
          %p238 = pneg %p59
        $region38: #{tpu_custom_call.1} parent=35 // pred_check_branch
          %240 = sbr.rel (%p238) target = $region40
        $region39: #{tpu_custom_call.1} parent=35 // pred_region
          %241 = dma.done %s234, 1536
        $region40: #{tpu_custom_call.1} parent=35 // pred_fallthru
          _
        %s242 = sand.u32 %s74, 1
        %s243 = scalar_lea.sflag [#allocation6], %s242
        %s244 = sand.u32 %s74, 1
        %s245 = smul.addr %s244, 96
        %s246 = scalar_lea.vmem [#allocation5], %s245
        // Predicated region
        $region41: #{tpu_custom_call.1} parent=35 // pred_check
          %p247 = pneg %p87
        $region42: #{tpu_custom_call.1} parent=35 // pred_check_branch
          %249 = sbr.rel (%p247) target = $region44
        $region43: #{tpu_custom_call.1} parent=35 // pred_region
          %250 = dma.done %s243, 1536
        $region44: #{tpu_custom_call.1} parent=35 // pred_fallthru
          _
        %s251 = sand.u32 %s46, 1
        %s252 = scalar_lea.sflag [#allocation3], %s251
        %s253 = sand.u32 %s46, 1
        %s254 = smul.addr %s253, 96
        %s255 = scalar_lea.vmem [#allocation2], %s254
        %p256 = pneg %p59
        %p257 = pneg %p56
        %s258 = sand.u32 %s74, 1
        %s259 = scalar_lea.sflag [#allocation6], %s258
        %s260 = sand.u32 %s74, 1
        %s261 = smul.addr %s260, 96
        %s262 = scalar_lea.vmem [#allocation5], %s261
        %p263 = pneg %p87
        %p264 = pneg %p84
        %p265 = pneg %p108
        %p266 = pneg %p105
        %p267 = pneg %p129
        %p268 = pneg %p126
        %p269 = pneg %p155
        %p270 = pneg %p152
        %s271 = sand.u32 %s142, 1
        %s272 = scalar_lea.sflag [#allocation4], %s271
        %s273 = sand.u32 %s142, 1
        %s274 = smul.addr %s273, 8
        %s275 = scalar_lea.vmem [#allocation7], %s274
        %s276 = sadd.s32 %s28, %s29
        %s277 = smul.u32 3, %s276
        %s278 = sadd.s32 %s28, %s29
        %s279 = smul.u32 3, %s278
        %p280 = scmp.eq.s32.totalorder %s29, 0
        // Predicated region
        $region45: #{tpu_custom_call.1} parent=35 // pred_check
          %p281 = pneg %p280
        $region46: #{tpu_custom_call.1} parent=35 // pred_check_branch
          %283 = sbr.rel (%p281) target = $region48
        $region47: #{tpu_custom_call.1} parent=35 // pred_region
          %vm284 = vcmask 64512
          %285 = vst.msk [vmem:[%s275] sm:$0xff] %vm284, 0.0
        $region48: #{tpu_custom_call.1} parent=35 // pred_fallthru
          _
        %v286 = vld [vmem:[%s237] sm:$0xff]
        %v287 = vld [vmem:[%s237 + $0x8] sm:$0xff]
        %v288 = vld [vmem:[%s237 + $0x10] sm:$0xff]
        %v289 = vld [vmem:[%s237 + $0x18] sm:$0xff]
        %v290 = vld [vmem:[%s237 + $0x20] sm:$0xff]
        %v291 = vld [vmem:[%s237 + $0x28] sm:$0xff]
        %v292 = vld [vmem:[%s237 + $0x30] sm:$0xff]
        %v293 = vld [vmem:[%s237 + $0x38] sm:$0xff]
        %v294 = vld [vmem:[%s237 + $0x40] sm:$0xff]
        %v295 = vld [vmem:[%s237 + $0x48] sm:$0xff]
        %v296 = vld [vmem:[%s237 + $0x50] sm:$0xff]
        %v297 = vld [vmem:[%s237 + $0x58] sm:$0xff]
        %v298 = vld [vmem:[%s246] sm:$0xff]
        %v299 = vld [vmem:[%s246 + $0x8] sm:$0xff]
        %v300 = vld [vmem:[%s246 + $0x10] sm:$0xff]
        %v301 = vld [vmem:[%s246 + $0x18] sm:$0xff]
        %v302 = vld [vmem:[%s246 + $0x20] sm:$0xff]
        %v303 = vld [vmem:[%s246 + $0x28] sm:$0xff]
        %v304 = vld [vmem:[%s246 + $0x30] sm:$0xff]
        %v305 = vld [vmem:[%s246 + $0x38] sm:$0xff]
        %v306 = vld [vmem:[%s246 + $0x40] sm:$0xff]
        %v307 = vld [vmem:[%s246 + $0x48] sm:$0xff]
        %v308 = vld [vmem:[%s246 + $0x50] sm:$0xff]
        %v309 = vld [vmem:[%s246 + $0x58] sm:$0xff]
        %v310 = vsub.f32 %v286, %v298
        %v311 = vsub.f32 %v287, %v299
        %v312 = vsub.f32 %v288, %v300
        %v313 = vsub.f32 %v289, %v301
        %v314 = vsub.f32 %v290, %v302
        %v315 = vsub.f32 %v291, %v303
        %v316 = vsub.f32 %v292, %v304
        %v317 = vsub.f32 %v293, %v305
        %v318 = vsub.f32 %v294, %v306
        %v319 = vsub.f32 %v295, %v307
        %v320 = vsub.f32 %v296, %v308
        %v321 = vsub.f32 %v297, %v309
        %v322 = vld [vmem:[%s2] sm:$0xff]
        %v323 = vld [vmem:[%s3] sm:$0xff]
        %v324 = vld [vmem:[%s3 + $0x8] sm:$0xff]
        %v325 = vld [vmem:[%s3 + $0x10] sm:$0xff]
        %v326 = vld [vmem:[%s3 + $0x18] sm:$0xff]
        %vm327 = vcmask 261120
        %v329 = vsel %vm327, %v310, 0
        %v332 = vsel %vm327, %v311, 0
        %v335 = vsel %vm327, %v312, 0
        %v338 = vsel %vm327, %v313, 0
        %v341 = vsel %vm327, %v314, 0
        %v344 = vsel %vm327, %v315, 0
        %v347 = vsel %vm327, %v316, 0
        %v350 = vsel %vm327, %v317, 0
        %v353 = vsel %vm327, %v318, 0
        %v356 = vsel %vm327, %v319, 0
        %v359 = vsel %vm327, %v320, 0
        %v362 = vsel %vm327, %v321, 0
        %364 = vmatprep.subr.mxu0 0.0
        %365 = vmatpush1.msra.mxu0 0.0
        %366 = vmatprep.subr.mxu0 0.0
        %367 = vmatpush1.msra.mxu0 0.0
        %368 = vmatprep.subr.mxu0 0.0
        %369 = vmatpush1.msra.mxu0 0.0
        %370 = vmatprep.subr.mxu0 0.0
        %371 = vmatpush1.msra.mxu0 0.0
        %372 = vmatprep.subr.mxu0 0.0
        %373 = vmatpush1.msra.mxu0 0.0
        %374 = vmatprep.subr.mxu0 0.0
        %375 = vmatpush1.msra.mxu0 0.0
        %376 = vmatprep.subr.mxu0 0.0
        %377 = vmatpush1.msra.mxu0 0.0
        %378 = vmatprep.subr.mxu0 0.0
        %379 = vmatpush1.msra.mxu0 0.0
        %380 = vmatprep.subr.mxu0 0.0
        %381 = vmatpush1.msra.mxu0 0.0
        %382 = vmatprep.subr.mxu0 0.0
        %383 = vmatpush1.msra.mxu0 0.0
        %384 = vmatprep.subr.mxu0 0.0
        %385 = vmatpush1.msra.mxu0 0.0
        %386 = vmatprep.subr.mxu0 0.0
        %387 = vmatpush1.msra.mxu0 0.0
        %388 = vmatprep.subr.mxu0 0.0
        %389 = vmatpush1.msra.mxu0 %v326
        %390 = vmatprep.subr.mxu0 0.0
        %391 = vmatpush1.msra.mxu0 %v325
        %392 = vmatprep.subr.mxu0 0.0
        %393 = vmatpush1.msra.mxu0 %v324
        %394 = vmatprep.subr.mxu0 0.0
        %395 = vmatpush1.msra.mxu0 %v323
        %396 = vmatprep.subr.mxu0 0.0
        %397 = vmatpush2.msra.mxu0 0.0
        %398 = vmatprep.subr.mxu0 0.0
        %399 = vmatpush2.msra.mxu0 0.0
        %400 = vmatprep.subr.mxu0 0.0
        %401 = vmatpush2.msra.mxu0 0.0
        %402 = vmatprep.subr.mxu0 0.0
        %403 = vmatpush2.msra.mxu0 0.0
        %404 = vmatprep.subr.mxu0 0.0
        %405 = vmatpush2.msra.mxu0 0.0
        %406 = vmatprep.subr.mxu0 0.0
        %407 = vmatpush2.msra.mxu0 0.0
        %408 = vmatprep.subr.mxu0 0.0
        %409 = vmatpush2.msra.mxu0 0.0
        %410 = vmatprep.subr.mxu0 0.0
        %411 = vmatpush2.msra.mxu0 0.0
        %412 = vmatprep.subr.mxu0 0.0
        %413 = vmatpush2.msra.mxu0 0.0
        %414 = vmatprep.subr.mxu0 0.0
        %415 = vmatpush2.msra.mxu0 0.0
        %416 = vmatprep.subr.mxu0 0.0
        %417 = vmatpush2.msra.mxu0 0.0
        %418 = vmatprep.subr.mxu0 0.0
        %419 = vmatpush2.msra.mxu0 0.0
        %420 = vmatprep.subr.mxu0 0.0
        %421 = vmatpush2.msra.mxu0 0.0
        %422 = vmatprep.subr.mxu0 0.0
        %423 = vmatpush2.msra.mxu0 0.0
        %424 = vmatprep.subr.mxu0 0.0
        %425 = vmatpush2.msra.mxu0 0.0
        %426 = vmatprep.subr.mxu0 0.0
        %427 = vmatpush2.msra.mxu0 0.0
        %428 = vmatprep.mubr.f32.mxu0 0.0
        %429 = vmatmul.mubr.f32.gmra.mxu0 %v329
        %v430 = vpop.f32.mrf.mxu0
        %v431 = vadd.f32 0.0, %v430
        %v432 = vpop.f32.mrf.mxu0
        %433 = vmatprep.mubr.f32.mxu0 0.0
        %434 = vmatmul.mubr.f32.gmra.mxu0 %v332
        %v435 = vpop.f32.mrf.mxu0
        %v436 = vadd.f32 0.0, %v435
        %v437 = vpop.f32.mrf.mxu0
        %438 = vmatprep.mubr.f32.mxu0 0.0
        %439 = vmatmul.mubr.f32.gmra.mxu0 %v335
        %v440 = vpop.f32.mrf.mxu0
        %v441 = vadd.f32 0.0, %v440
        %v442 = vpop.f32.mrf.mxu0
        %443 = vmatprep.mubr.f32.mxu0 0.0
        %444 = vmatmul.mubr.f32.gmra.mxu0 %v338
        %v445 = vpop.f32.mrf.mxu0
        %v446 = vadd.f32 0.0, %v445
        %v447 = vpop.f32.mrf.mxu0
        %448 = vmatprep.mubr.f32.mxu0 0.0
        %449 = vmatmul.mubr.f32.gmra.mxu0 %v341
        %v450 = vpop.f32.mrf.mxu0
        %v451 = vadd.f32 0.0, %v450
        %v452 = vpop.f32.mrf.mxu0
        %453 = vmatprep.mubr.f32.mxu0 0.0
        %454 = vmatmul.mubr.f32.gmra.mxu0 %v344
        %v455 = vpop.f32.mrf.mxu0
        %v456 = vadd.f32 0.0, %v455
        %v457 = vpop.f32.mrf.mxu0
        %458 = vmatprep.mubr.f32.mxu0 0.0
        %459 = vmatmul.mubr.f32.gmra.mxu0 %v347
        %v460 = vpop.f32.mrf.mxu0
        %v461 = vadd.f32 0.0, %v460
        %v462 = vpop.f32.mrf.mxu0
        %463 = vmatprep.mubr.f32.mxu0 0.0
        %464 = vmatmul.mubr.f32.gmra.mxu0 %v350
        %v465 = vpop.f32.mrf.mxu0
        %v466 = vadd.f32 0.0, %v465
        %v467 = vpop.f32.mrf.mxu0
        %468 = vmatprep.mubr.f32.mxu0 0.0
        %469 = vmatmul.mubr.f32.gmra.mxu0 %v353
        %v470 = vpop.f32.mrf.mxu0
        %v471 = vadd.f32 0.0, %v470
        %v472 = vpop.f32.mrf.mxu0
        %473 = vmatprep.mubr.f32.mxu0 0.0
        %474 = vmatmul.mubr.f32.gmra.mxu0 %v356
        %v475 = vpop.f32.mrf.mxu0
        %v476 = vadd.f32 0.0, %v475
        %v477 = vpop.f32.mrf.mxu0
        %478 = vmatprep.mubr.f32.mxu0 0.0
        %479 = vmatmul.mubr.f32.gmra.mxu0 %v359
        %v480 = vpop.f32.mrf.mxu0
        %v481 = vadd.f32 0.0, %v480
        %v482 = vpop.f32.mrf.mxu0
        %483 = vmatprep.mubr.f32.mxu0 0.0
        %484 = vmatmul.mubr.f32.gmra.mxu0 %v362
        %v485 = vpop.f32.mrf.mxu0
        %v486 = vadd.f32 0.0, %v485
        %v487 = vpop.f32.mrf.mxu0
        %488 = vdwg.mxu0
        %v490 = vsel %vm327, %v322, 0
        %492 = vmatprep.subr.mxu0 0.0
        %493 = vmatpush1.msra.mxu0 0.0
        %494 = vmatprep.subr.mxu0 0.0
        %495 = vmatpush1.msra.mxu0 0.0
        %496 = vmatprep.subr.mxu0 0.0
        %497 = vmatpush1.msra.mxu0 0.0
        %498 = vmatprep.subr.mxu0 0.0
        %499 = vmatpush1.msra.mxu0 0.0
        %500 = vmatprep.subr.mxu0 0.0
        %501 = vmatpush1.msra.mxu0 0.0
        %502 = vmatprep.subr.mxu0 0.0
        %503 = vmatpush1.msra.mxu0 0.0
        %504 = vmatprep.subr.mxu0 0.0
        %505 = vmatpush1.msra.mxu0 0.0
        %506 = vmatprep.subr.mxu0 0.0
        %507 = vmatpush1.msra.mxu0 0.0
        %508 = vmatprep.subr.mxu0 0.0
        %509 = vmatpush1.msra.mxu0 0.0
        %510 = vmatprep.subr.mxu0 0.0
        %511 = vmatpush1.msra.mxu0 0.0
        %512 = vmatprep.subr.mxu0 0.0
        %513 = vmatpush1.msra.mxu0 0.0
        %514 = vmatprep.subr.mxu0 0.0
        %515 = vmatpush1.msra.mxu0 0.0
        %516 = vmatprep.subr.mxu0 0.0
        %517 = vmatpush1.msra.mxu0 %v446
        %518 = vmatprep.subr.mxu0 0.0
        %519 = vmatpush1.msra.mxu0 %v441
        %520 = vmatprep.subr.mxu0 0.0
        %521 = vmatpush1.msra.mxu0 %v436
        %522 = vmatprep.subr.mxu0 0.0
        %523 = vmatpush1.msra.mxu0 %v431
        %524 = vmatprep.subr.mxu0 0.0
        %525 = vmatpush2.msra.mxu0 0.0
        %526 = vmatprep.subr.mxu0 0.0
        %527 = vmatpush2.msra.mxu0 0.0
        %528 = vmatprep.subr.mxu0 0.0
        %529 = vmatpush2.msra.mxu0 0.0
        %530 = vmatprep.subr.mxu0 0.0
        %531 = vmatpush2.msra.mxu0 0.0
        %532 = vmatprep.subr.mxu0 0.0
        %533 = vmatpush2.msra.mxu0 0.0
        %534 = vmatprep.subr.mxu0 0.0
        %535 = vmatpush2.msra.mxu0 0.0
        %536 = vmatprep.subr.mxu0 0.0
        %537 = vmatpush2.msra.mxu0 0.0
        %538 = vmatprep.subr.mxu0 0.0
        %539 = vmatpush2.msra.mxu0 0.0
        %540 = vmatprep.subr.mxu0 0.0
        %541 = vmatpush2.msra.mxu0 0.0
        %542 = vmatprep.subr.mxu0 0.0
        %543 = vmatpush2.msra.mxu0 0.0
        %544 = vmatprep.subr.mxu0 0.0
        %545 = vmatpush2.msra.mxu0 0.0
        %546 = vmatprep.subr.mxu0 0.0
        %547 = vmatpush2.msra.mxu0 0.0
        %548 = vmatprep.subr.mxu0 0.0
        %549 = vmatpush2.msra.mxu0 0.0
        %550 = vmatprep.subr.mxu0 0.0
        %551 = vmatpush2.msra.mxu0 0.0
        %552 = vmatprep.subr.mxu0 0.0
        %553 = vmatpush2.msra.mxu0 0.0
        %554 = vmatprep.subr.mxu0 0.0
        %555 = vmatpush2.msra.mxu0 0.0
        %556 = vmatprep.mubr.f32.mxu0 0.0
        %557 = vmatmul.mubr.f32.gmra.mxu0 %v490
        %v558 = vpop.f32.mrf.mxu0
        %v559 = vadd.f32 0.0, %v558
        %v560 = vpop.f32.mrf.mxu0
        %561 = vdwg.mxu0
        %v562 = vand.u32 2147483647, %v559
        %v563 = vadd.f32 %v562, 0.0
        %564 = vmatprep.subr.mxu0 0.0
        %565 = vmatpush1.msra.mxu0 0.0
        %566 = vmatprep.subr.mxu0 0.0
        %567 = vmatpush1.msra.mxu0 0.0
        %568 = vmatprep.subr.mxu0 0.0
        %569 = vmatpush1.msra.mxu0 0.0
        %570 = vmatprep.subr.mxu0 0.0
        %571 = vmatpush1.msra.mxu0 0.0
        %572 = vmatprep.subr.mxu0 0.0
        %573 = vmatpush1.msra.mxu0 0.0
        %574 = vmatprep.subr.mxu0 0.0
        %575 = vmatpush1.msra.mxu0 0.0
        %576 = vmatprep.subr.mxu0 0.0
        %577 = vmatpush1.msra.mxu0 0.0
        %578 = vmatprep.subr.mxu0 0.0
        %579 = vmatpush1.msra.mxu0 0.0
        %580 = vmatprep.subr.mxu0 0.0
        %581 = vmatpush1.msra.mxu0 0.0
        %582 = vmatprep.subr.mxu0 0.0
        %583 = vmatpush1.msra.mxu0 0.0
        %584 = vmatprep.subr.mxu0 0.0
        %585 = vmatpush1.msra.mxu0 0.0
        %586 = vmatprep.subr.mxu0 0.0
        %587 = vmatpush1.msra.mxu0 0.0
        %588 = vmatprep.subr.mxu0 0.0
        %589 = vmatpush1.msra.mxu0 %v466
        %590 = vmatprep.subr.mxu0 0.0
        %591 = vmatpush1.msra.mxu0 %v461
        %592 = vmatprep.subr.mxu0 0.0
        %593 = vmatpush1.msra.mxu0 %v456
        %594 = vmatprep.subr.mxu0 0.0
        %595 = vmatpush1.msra.mxu0 %v451
        %596 = vmatprep.subr.mxu0 0.0
        %597 = vmatpush2.msra.mxu0 0.0
        %598 = vmatprep.subr.mxu0 0.0
        %599 = vmatpush2.msra.mxu0 0.0
        %600 = vmatprep.subr.mxu0 0.0
        %601 = vmatpush2.msra.mxu0 0.0
        %602 = vmatprep.subr.mxu0 0.0
        %603 = vmatpush2.msra.mxu0 0.0
        %604 = vmatprep.subr.mxu0 0.0
        %605 = vmatpush2.msra.mxu0 0.0
        %606 = vmatprep.subr.mxu0 0.0
        %607 = vmatpush2.msra.mxu0 0.0
        %608 = vmatprep.subr.mxu0 0.0
        %609 = vmatpush2.msra.mxu0 0.0
        %610 = vmatprep.subr.mxu0 0.0
        %611 = vmatpush2.msra.mxu0 0.0
        %612 = vmatprep.subr.mxu0 0.0
        %613 = vmatpush2.msra.mxu0 0.0
        %614 = vmatprep.subr.mxu0 0.0
        %615 = vmatpush2.msra.mxu0 0.0
        %616 = vmatprep.subr.mxu0 0.0
        %617 = vmatpush2.msra.mxu0 0.0
        %618 = vmatprep.subr.mxu0 0.0
        %619 = vmatpush2.msra.mxu0 0.0
        %620 = vmatprep.subr.mxu0 0.0
        %621 = vmatpush2.msra.mxu0 0.0
        %622 = vmatprep.subr.mxu0 0.0
        %623 = vmatpush2.msra.mxu0 0.0
        %624 = vmatprep.subr.mxu0 0.0
        %625 = vmatpush2.msra.mxu0 0.0
        %626 = vmatprep.subr.mxu0 0.0
        %627 = vmatpush2.msra.mxu0 0.0
        %628 = vmatprep.mubr.f32.mxu0 0.0
        %629 = vmatmul.mubr.f32.gmra.mxu0 %v490
        %v630 = vpop.f32.mrf.mxu0
        %v631 = vadd.f32 0.0, %v630
        %v632 = vpop.f32.mrf.mxu0
        %633 = vdwg.mxu0
        %v634 = vand.u32 2147483647, %v631
        %v635 = vadd.f32 %v563, %v634
        %636 = vmatprep.subr.mxu0 0.0
        %637 = vmatpush1.msra.mxu0 0.0
        %638 = vmatprep.subr.mxu0 0.0
        %639 = vmatpush1.msra.mxu0 0.0
        %640 = vmatprep.subr.mxu0 0.0
        %641 = vmatpush1.msra.mxu0 0.0
        %642 = vmatprep.subr.mxu0 0.0
        %643 = vmatpush1.msra.mxu0 0.0
        %644 = vmatprep.subr.mxu0 0.0
        %645 = vmatpush1.msra.mxu0 0.0
        %646 = vmatprep.subr.mxu0 0.0
        %647 = vmatpush1.msra.mxu0 0.0
        %648 = vmatprep.subr.mxu0 0.0
        %649 = vmatpush1.msra.mxu0 0.0
        %650 = vmatprep.subr.mxu0 0.0
        %651 = vmatpush1.msra.mxu0 0.0
        %652 = vmatprep.subr.mxu0 0.0
        %653 = vmatpush1.msra.mxu0 0.0
        %654 = vmatprep.subr.mxu0 0.0
        %655 = vmatpush1.msra.mxu0 0.0
        %656 = vmatprep.subr.mxu0 0.0
        %657 = vmatpush1.msra.mxu0 0.0
        %658 = vmatprep.subr.mxu0 0.0
        %659 = vmatpush1.msra.mxu0 0.0
        %660 = vmatprep.subr.mxu0 0.0
        %661 = vmatpush1.msra.mxu0 %v486
        %662 = vmatprep.subr.mxu0 0.0
        %663 = vmatpush1.msra.mxu0 %v481
        %664 = vmatprep.subr.mxu0 0.0
        %665 = vmatpush1.msra.mxu0 %v476
        %666 = vmatprep.subr.mxu0 0.0
        %667 = vmatpush1.msra.mxu0 %v471
        %668 = vmatprep.subr.mxu0 0.0
        %669 = vmatpush2.msra.mxu0 0.0
        %670 = vmatprep.subr.mxu0 0.0
        %671 = vmatpush2.msra.mxu0 0.0
        %672 = vmatprep.subr.mxu0 0.0
        %673 = vmatpush2.msra.mxu0 0.0
        %674 = vmatprep.subr.mxu0 0.0
        %675 = vmatpush2.msra.mxu0 0.0
        %676 = vmatprep.subr.mxu0 0.0
        %677 = vmatpush2.msra.mxu0 0.0
        %678 = vmatprep.subr.mxu0 0.0
        %679 = vmatpush2.msra.mxu0 0.0
        %680 = vmatprep.subr.mxu0 0.0
        %681 = vmatpush2.msra.mxu0 0.0
        %682 = vmatprep.subr.mxu0 0.0
        %683 = vmatpush2.msra.mxu0 0.0
        %684 = vmatprep.subr.mxu0 0.0
        %685 = vmatpush2.msra.mxu0 0.0
        %686 = vmatprep.subr.mxu0 0.0
        %687 = vmatpush2.msra.mxu0 0.0
        %688 = vmatprep.subr.mxu0 0.0
        %689 = vmatpush2.msra.mxu0 0.0
        %690 = vmatprep.subr.mxu0 0.0
        %691 = vmatpush2.msra.mxu0 0.0
        %692 = vmatprep.subr.mxu0 0.0
        %693 = vmatpush2.msra.mxu0 0.0
        %694 = vmatprep.subr.mxu0 0.0
        %695 = vmatpush2.msra.mxu0 0.0
        %696 = vmatprep.subr.mxu0 0.0
        %697 = vmatpush2.msra.mxu0 0.0
        %698 = vmatprep.subr.mxu0 0.0
        %699 = vmatpush2.msra.mxu0 0.0
        %700 = vmatprep.mubr.f32.mxu0 0.0
        %701 = vmatmul.mubr.f32.gmra.mxu0 %v490
        %v702 = vpop.f32.mrf.mxu0
        %v703 = vadd.f32 0.0, %v702
        %v704 = vpop.f32.mrf.mxu0
        %705 = vdwg.mxu0
        %v706 = vand.u32 2147483647, %v703
        %v707 = vadd.f32 %v635, %v706
        %v708 = vld [vmem:[%s275] sm:$0xff]
        %v709 = vadd.f32 %v708, %v707
        %vm710 = vcmask 64512
        %711 = vst.msk [vmem:[%s275] sm:$0xff] %vm710, %v709
        %s712 = sand.u32 %s142, 1
        %s713 = scalar_lea.sflag [#allocation4], %s712
        %s714 = sand.u32 %s142, 1
        %s715 = smul.addr %s714, 8
        %s716 = scalar_lea.vmem [#allocation7], %s715
        // Predicated region
        $region49: #{tpu_custom_call.1} parent=35 // pred_check
          %p717 = pneg %p152
        $region50: #{tpu_custom_call.1} parent=35 // pred_check_branch
          %719 = sbr.rel (%p717) target = $region52
        $region51: #{tpu_custom_call.1} parent=35 // pred_region
          %s721 = ssub.s32 128, 128
          %722 = vsyncadd %s713, %s721
          %s723 = smul.addr %s28, 128
          %s724 = scalar_lea.hbm %s4, %s723
          %s726 = sshll.u32 %s716, 4
          %s727 = int_to_ptr.vmem [resolvable:$true] %s726
          %729 = dma.vmem_to_hbm [thread:$0]  %s727, 128, %s724, %s713
        $region52: #{tpu_custom_call.1} parent=35 // pred_fallthru
          _
      $region36: #{tpu_custom_call.1} parent=5 // pred_fallthru
        _
      %p730 = scmp.le.s32.totalorder 2, %s19
      // Predicated region
      $region53: #{tpu_custom_call.1} parent=5 // pred_check
        %p731 = pneg %p730
      $region54: #{tpu_custom_call.1} parent=5 // pred_check_branch
        %733 = sbr.rel (%p731) target = $region56
      $region55: #{tpu_custom_call.1} parent=5 // pred_region
        %s734 = ssub.s32 %s19, 2
        // Predicated region
        $region57: #{tpu_custom_call.1} parent=55 // pred_check
          %p735 = pneg %p158
        $region58: #{tpu_custom_call.1} parent=55 // pred_check_branch
          %737 = sbr.rel (%p735) target = $region60
        $region59: #{tpu_custom_call.1} parent=55 // pred_region
          %s738 = sand.u32 %s143, 1
          %s739 = scalar_lea.sflag [#allocation4], %s738
          %s740 = sand.u32 %s143, 1
          %s741 = smul.addr %s740, 8
          %s742 = scalar_lea.vmem [#allocation7], %s741
          %743 = dma.done %s739, 128
        $region60: #{tpu_custom_call.1} parent=55 // pred_fallthru
          _
      $region56: #{tpu_custom_call.1} parent=5 // pred_fallthru
        _
    $region6: #{tpu_custom_call.1} parent=1 // loop_footer
      %s23 = sadd.s32 1, %s19
    $region7: #{tpu_custom_call.1} parent=1 // loop_footer_branch
      %18 = sbr.rel target = $region3
    $region8: #{tpu_custom_call.1} parent=1 // loop_exit
      _
    %744 = vsyncpa [#allocation3], 1
    %s745 = scalar_lea.sflag [#allocation3], 1
    %746 = vsyncpa %s745, 1
    %747 = vsyncpa [#allocation6], 1
    %s748 = scalar_lea.sflag [#allocation6], 1
    %749 = vsyncpa %s748, 1
    %750 = vsyncpa [#allocation4], 1
    %s751 = scalar_lea.sflag [#allocation4], 1
    %752 = vsyncpa %s751, 1

</llo_original>
